<compile_context>
chip_gen: v7x
topology: tpu7x:2x2x1
jax: 0.10.0
libtpu: 0.0.40
codegen_flags: <defaults>
</compile_context>

<pallas_src>
import jax
import jax.numpy as jnp
from jax.experimental import pallas as pl
from jax.experimental.pallas import tpu as pltpu  # noqa: F401  (TPU backend)


def linear_kernel(x_ref, w_ref, b_ref, o_ref):
    # addmm: o = x @ w + b  (one MXU push with f32 accumulation; bias add fused
    # on the VPU — the VALU slot has plenty of slack at this size).
    acc = jnp.dot(x_ref[...], w_ref[...], preferred_element_type=jnp.float32)
    o_ref[...] = (acc + b_ref[...]).astype(o_ref.dtype)


def pallas_linear(x, w, b):
    """x: (M, K), w: (K, N), b: (1, N) -> (M, N).

    Single grid point, full-array blocks: block_shape equal to the full array
    dims is exempt from the (8,128) divisibility constraint, so the tiny
    operands go through untouched (no padding, no slicing).
    """
    M, K = x.shape
    K2, N = w.shape
    assert K == K2
    assert b.shape == (1, N)

    return pl.pallas_call(
        linear_kernel,
        out_shape=jax.ShapeDtypeStruct((M, N), x.dtype),
        in_specs=[
            pl.BlockSpec((M, K), lambda: (0, 0)),
            pl.BlockSpec((K, N), lambda: (0, 0)),
            pl.BlockSpec((1, N), lambda: (0, 0)),
        ],
        out_specs=pl.BlockSpec((M, N), lambda: (0, 0)),
    )(x, w, b)


@jax.jit
def forward(x, w, b):
    y = pallas_linear(x, w, b)                 # (2, 3) @ (3, 4) + b -> (2, 4)
    # TODO(synk): reference reshape (2, 2) is invalid for 8 elements; use (4, 2).
    return jnp.reshape(y, (4, 2))


class Model:
    """JAX/Pallas port of the PyTorch Model: Linear(3, 4) followed by reshape."""

    def __init__(self, key):
        kw, kb = jax.random.split(key)
        in_f, out_f = 3, 4
        # Deterministic init mimicking nn.Linear's uniform(-1/sqrt(in), 1/sqrt(in)).
        bound = 1.0 / jnp.sqrt(jnp.float32(in_f))
        # Stored already transposed: (in_features, out_features).
        self.w = jax.random.uniform(kw, (in_f, out_f), jnp.float32, -bound, bound)
        self.b = jax.random.uniform(kb, (1, out_f), jnp.float32, -bound, bound)

    def __call__(self, x):
        return forward(x, self.w, self.b)


if __name__ == "__main__":
    key = jax.random.PRNGKey(0)
    k_x, k_m = jax.random.split(key)
    x = jax.random.normal(k_x, (2, 3), jnp.float32)

    model = Model(k_m)
    out = model(x)
    out = jax.block_until_ready(out)

    # Sanity check against plain-JAX reference.
    ref = jnp.reshape(x @ model.w + model.b, (4, 2))
    assert out.shape == (4, 2)
    assert jnp.allclose(out, ref, atol=1e-5, rtol=1e-5), "mismatch vs reference"

    print("KERNEL_OK")
</pallas_src>

<mosaic_0001>
module attributes {stable_mosaic.version = 11 : i64} {
  func.func @linear_kernel(%arg0: memref<2x3xf32, #tpu.memory_space<vmem>>, %arg1: memref<3x4xf32, #tpu.memory_space<vmem>>, %arg2: memref<1x4xf32, #tpu.memory_space<vmem>>, %arg3: memref<2x4xf32, #tpu.memory_space<vmem>>) attributes {dimension_semantics = [], scalar_prefetch = 0 : i64, scratch_operands = 0 : i64, tpu.core_type = #tpu.core_type<tc>} {
    %c0 = arith.constant 0 : index
    %c0_0 = arith.constant 0 : index
    %0 = vector.load %arg0[%c0, %c0_0] : memref<2x3xf32, #tpu.memory_space<vmem>>, vector<2x3xf32>
    %c0_1 = arith.constant 0 : index
    %c0_2 = arith.constant 0 : index
    %1 = vector.load %arg1[%c0_1, %c0_2] : memref<3x4xf32, #tpu.memory_space<vmem>>, vector<3x4xf32>
    %cst = arith.constant dense<0.000000e+00> : vector<2x4xf32>
    %2 = tpu.matmul %0, %1, %cst {dimension_numbers = #tpu.dot_dimension_numbers<[1], [0], [0], [1], [0, 0, 1, 1], [], []>} : vector<2x3xf32>, vector<3x4xf32>, vector<2x4xf32> -> vector<2x4xf32>
    %c0_3 = arith.constant 0 : index
    %c0_4 = arith.constant 0 : index
    %3 = vector.load %arg2[%c0_3, %c0_4] : memref<1x4xf32, #tpu.memory_space<vmem>>, vector<1x4xf32>
    %4 = vector.broadcast %3 : vector<1x4xf32> to vector<2x4xf32>
    %5 = arith.addf %2, %4 : vector<2x4xf32>
    %c0_5 = arith.constant 0 : index
    %c0_6 = arith.constant 0 : index
    %6 = vector.load %arg3[%c0_5, %c0_6] : memref<2x4xf32, #tpu.memory_space<vmem>>, vector<2x4xf32>
    tpu.vector_store %arg3[%c0_5, %c0_6], %5 {strides = array<i32>} : memref<2x4xf32, #tpu.memory_space<vmem>>, vector<2x4xf32>,
    return
  }
}

</mosaic_0001>

<llo_original>
// kernel: forward.1
$region0: #{forward.1}
  #allocation0 [shape = 'u32[]', space=smem, size = 0x4, offset = 0x4, fixed_abs, tag = 'smem constant byte address 0x4 - core index']
  #allocation1 [shape = 'u32[144,128]{1,0:T(1,128)}', space=vmem, size = 0x12000, scoped, tag = 'internal scratch']
  %s0 = inlined_call_operand.hbm [shape: f32[2,3], index: 0, kind: input, shape index: {}]
  %s1 = inlined_call_operand.hbm [shape: f32[3,4], index: 1, kind: input, shape index: {}]
  %s2 = inlined_call_operand.vmem [shape: f32[1,4], index: 2, kind: input, shape index: {}]
  %s3 = inlined_call_operand.vmem [shape: f32[2,4], index: 3, kind: output, shape index: {}]
  %s4 = sld [smem:[#allocation0]]
  $region30: #{forward.1} parent=0
    _
  %s6 = ssub.s32 1, %s4
  %s7 = scalar_select 0, %s6, %s4
  $region1: #{forward.1} parent=0
    #allocation2 [shape = 'u8[1024]{0}', space=vmem, size = 0x400, scoped, tag = 'input window, operand 0, single buffered']
    #allocation3 [shape = 's32[1]{0}', space=sflag, size = 0x4, scoped, tag = 'scoped memory for forward.1']
    #allocation4 [shape = 'u8[2048]{0}', space=vmem, size = 0x800, scoped, tag = 'input window, operand 1, single buffered']
    #allocation5 [shape = 's32[1]{0}', space=sflag, size = 0x4, scoped, tag = 'scoped memory for forward.1']
    %8 = vsyncpa [#allocation3], 0
    %9 = vsyncpa [#allocation5], 0
    // Predicated region
    $region2: #{forward.1} parent=1 // pred_check
      _
    $region3: #{forward.1} parent=1 // pred_check_branch
      %11 = sbr.rel (0) target = $region5
    $region4: #{forward.1} parent=1 // pred_region
      %s13 = ssub.s32 32, 32
      %14 = vsyncadd [#allocation3], %s13
      %s16 = sshll.u32 [#allocation2], 4
      %s17 = int_to_ptr.vmem [resolvable:$true] %s16
      %19 = dma.hbm_to_vmem [thread:$0]  %s0, 32, %s17, [#allocation3]
    $region5: #{forward.1} parent=1 // pred_fallthru
      _
    // Predicated region
    $region6: #{forward.1} parent=1 // pred_check
      _
    $region7: #{forward.1} parent=1 // pred_check_branch
      %21 = sbr.rel (0) target = $region9
    $region8: #{forward.1} parent=1 // pred_region
      %s23 = ssub.s32 64, 64
      %24 = vsyncadd [#allocation5], %s23
      %s26 = sshll.u32 [#allocation4], 4
      %s27 = int_to_ptr.vmem [resolvable:$true] %s26
      %29 = dma.hbm_to_vmem [thread:$0]  %s1, 64, %s27, [#allocation5]
    $region9: #{forward.1} parent=1 // pred_fallthru
      _
    // Predicated region
    $region10: #{forward.1} parent=1 // pred_check
      _
    $region11: #{forward.1} parent=1 // pred_check_branch
      %31 = sbr.rel (0) target = $region13
    $region12: #{forward.1} parent=1 // pred_region
      _
    $region13: #{forward.1} parent=1 // pred_fallthru
      _
    // Predicated region
    $region14: #{forward.1} parent=1 // pred_check
      _
    $region15: #{forward.1} parent=1 // pred_check_branch
      %33 = sbr.rel (0) target = $region17
    $region16: #{forward.1} parent=1 // pred_region
      %34 = dma.done [#allocation3], 32
    $region17: #{forward.1} parent=1 // pred_fallthru
      _
    // Predicated region
    $region18: #{forward.1} parent=1 // pred_check
      _
    $region19: #{forward.1} parent=1 // pred_check_branch
      %36 = sbr.rel (0) target = $region21
    $region20: #{forward.1} parent=1 // pred_region
      %37 = dma.done [#allocation5], 64
    $region21: #{forward.1} parent=1 // pred_fallthru
      _
    %v38 = vld [vmem:[#allocation2] sm:$0x3]
    %v39 = vld [vmem:[#allocation4] sm:$0x7]
    %v40 = vld [vmem:[%s2] sm:$0x1]
    %v42 = vlaneseq
    %v43 = vshrl.u32 %v42, 7
    %v44 = vsub.s32 0, %v43
    %v45 = vrot.slane %v40, %v44
    %vm47 = vcmask 23552
    %v49 = vsel %vm47, %v38, 0
    %vm51 = vcmask 1042432
    %v53 = vsel %vm51, %v39, 0
    %55 = vmatprep.subr.mxu0 0.0
    %56 = vmatpush1.msra.mxu0 %v53
    %57 = vmatprep.subr.mxu0 0.0
    %58 = vmatpush1.msra.mxu0 0.0
    %59 = vmatprep.subr.mxu0 0.0
    %60 = vmatpush1.msra.mxu0 0.0
    %61 = vmatprep.subr.mxu0 0.0
    %62 = vmatpush1.msra.mxu0 0.0
    %63 = vmatprep.subr.mxu0 0.0
    %64 = vmatpush1.msra.mxu0 0.0
    %65 = vmatprep.subr.mxu0 0.0
    %66 = vmatpush1.msra.mxu0 0.0
    %67 = vmatprep.subr.mxu0 0.0
    %68 = vmatpush1.msra.mxu0 0.0
    %69 = vmatprep.subr.mxu0 0.0
    %70 = vmatpush1.msra.mxu0 0.0
    %71 = vmatprep.subr.mxu0 0.0
    %72 = vmatpush1.msra.mxu0 0.0
    %73 = vmatprep.subr.mxu0 0.0
    %74 = vmatpush1.msra.mxu0 0.0
    %75 = vmatprep.subr.mxu0 0.0
    %76 = vmatpush1.msra.mxu0 0.0
    %77 = vmatprep.subr.mxu0 0.0
    %78 = vmatpush1.msra.mxu0 0.0
    %79 = vmatprep.subr.mxu0 0.0
    %80 = vmatpush1.msra.mxu0 0.0
    %81 = vmatprep.subr.mxu0 0.0
    %82 = vmatpush1.msra.mxu0 0.0
    %83 = vmatprep.subr.mxu0 0.0
    %84 = vmatpush1.msra.mxu0 0.0
    %85 = vmatprep.subr.mxu0 0.0
    %86 = vmatpush1.msra.mxu0 0.0
    %87 = vmatprep.subr.mxu0 0.0
    %88 = vmatpush1.msra.mxu0 0.0
    %89 = vmatprep.subr.mxu0 0.0
    %90 = vmatpush1.msra.mxu0 0.0
    %91 = vmatprep.subr.mxu0 0.0
    %92 = vmatpush1.msra.mxu0 0.0
    %93 = vmatprep.subr.mxu0 0.0
    %94 = vmatpush1.msra.mxu0 0.0
    %95 = vmatprep.subr.mxu0 0.0
    %96 = vmatpush1.msra.mxu0 0.0
    %97 = vmatprep.subr.mxu0 0.0
    %98 = vmatpush1.msra.mxu0 0.0
    %99 = vmatprep.subr.mxu0 0.0
    %100 = vmatpush1.msra.mxu0 0.0
    %101 = vmatprep.subr.mxu0 0.0
    %102 = vmatpush1.msra.mxu0 0.0
    %103 = vmatprep.subr.mxu0 0.0
    %104 = vmatpush1.msra.mxu0 0.0
    %105 = vmatprep.subr.mxu0 0.0
    %106 = vmatpush1.msra.mxu0 0.0
    %107 = vmatprep.subr.mxu0 0.0
    %108 = vmatpush1.msra.mxu0 0.0
    %109 = vmatprep.subr.mxu0 0.0
    %110 = vmatpush1.msra.mxu0 0.0
    %111 = vmatprep.subr.mxu0 0.0
    %112 = vmatpush1.msra.mxu0 0.0
    %113 = vmatprep.subr.mxu0 0.0
    %114 = vmatpush1.msra.mxu0 0.0
    %115 = vmatprep.subr.mxu0 0.0
    %116 = vmatpush1.msra.mxu0 0.0
    %117 = vmatprep.subr.mxu0 0.0
    %118 = vmatpush1.msra.mxu0 0.0
    %119 = vmatprep.mubr.f32.mxu0 0.0
    %120 = vmatmul.mubr.f32.gmra.mrb[0].mxu0 %v49
    %v121 = vpop.f32.mrb[0].mxu0
    %v122 = vadd.f32 %v45, %v121
    %v123 = vpop.f32.mrb[0].mxu0
    %124 = vdwg.mxu0
    %vm125 = vcmask 25600
    %126 = vst.msk [vmem:[%s3] sm:$0x3] %vm125, %v122
    // Predicated region
    $region22: #{forward.1} parent=1 // pred_check
      _
    $region23: #{forward.1} parent=1 // pred_check_branch
      %128 = sbr.rel (0) target = $region25
    $region24: #{forward.1} parent=1 // pred_region
      _
    $region25: #{forward.1} parent=1 // pred_fallthru
      _
    // Predicated region
    $region26: #{forward.1} parent=1 // pred_check
      _
    $region27: #{forward.1} parent=1 // pred_check_branch
      %130 = sbr.rel (0) target = $region29
    $region28: #{forward.1} parent=1 // pred_region
      _
    $region29: #{forward.1} parent=1 // pred_fallthru
      _
    %131 = vsyncpa [#allocation3], 1
    %132 = vsyncpa [#allocation5], 1

</llo_original>
